<compile_context>
chip_gen: v5e
topology: v5e:2x2
jax: 0.10.0
libtpu: 0.0.40
codegen_flags: <defaults>
</compile_context>

<pallas_src>
import functools

import jax
import jax.numpy as jnp
from jax.experimental import pallas as pl
from jax.experimental.pallas import tpu as pltpu

VMEM_SPEC = pl.BlockSpec(memory_space=pltpu.MemorySpace.VMEM)
LANE = 128          # lane (last-dim) pad for MXU outputs / stores / weight last dims
SUBLANE_BF16 = 16   # sublane pad for bf16 operands (N)
SUBLANE_F32 = 8     # sublane pad for f32 operands (G)


def _round_up(v, m):
    return ((v + m - 1) // m) * m


def _pad_to(arr, shape):
    out = jnp.zeros(shape, arr.dtype)
    return out.at[tuple(slice(0, s) for s in arr.shape)].set(arr)


# ------------------------------ Fused Pallas kernel -------------------------------

def _res_graph_kernel(
    a_ref, x_ref, oh_ref, pool_ref,
    w0_1, b0_1, ws_1, bs_1,
    w0_2, b0_2, ws_2, bs_2,
    w0_3, b0_3, ws_3, bs_3,
    linw_ref, linb_ref,
    y_ref, g_ref,
    *, num_layers,
):
    bf = jnp.bfloat16
    a = a_ref[...]        # bf16 [Np, Np]  normalized adjacency, VMEM-resident once
    oh = oh_ref[...]      # f32  [Np, Gp]  one-hot(batch)      (exact 0/1)
    pool = pool_ref[...]  # f32  [Gp, Np]  mean-pool operator  (exact 1/count)

    # Hoisted across all three blocks: A @ x.  By associativity the to_hidden conv
    # A @ (x @ W0) + b0 == (A @ x) @ W0 + b0, so the N^2-cost adjacency product on the
    # raw features is computed exactly once (and on F, which is narrower than H).
    ax = jnp.dot(a, x_ref[...], preferred_element_type=jnp.float32).astype(bf)  # [Np, Fp]

    def block(w0_r, b0_r, ws_r, bs_r, gh):
        # to_hidden conv: no residual, no ReLU, no dropout (matches the PyTorch forward).
        h = jnp.dot(ax, w0_r[...], preferred_element_type=jnp.float32) + b0_r[...]
        # Node residual x[i] += graph_hidden[batch[i]]  ==  onehot @ graph_hidden.
        # graph_hidden is constant across the L layers -> computed once per block, f32.
        res = None if gh is None else jnp.dot(oh, gh, preferred_element_type=jnp.float32)
        for l in range(num_layers):        # static unroll; L is a compile-time constant
            h_in = h if res is None else h + res
            hw = jnp.dot(h_in.astype(bf), ws_r[l],
                         preferred_element_type=jnp.float32).astype(bf)
            h = jnp.maximum(jnp.dot(a, hw, preferred_element_type=jnp.float32)
                            + bs_r[l], 0.0)            # F.relu; dropout == identity (eval)
        # global_mean_pool in f32 (keeps 1/count exact); tiny [Gp, Np] @ [Np, Hp] matmul.
        gm = jnp.dot(pool, h, preferred_element_type=jnp.float32)
        return gm if gh is None else gm + gh            # post-pool graph residual

    g1 = block(w0_1, b0_1, ws_1, bs_1, None)
    g2 = block(w0_2, b0_2, ws_2, bs_2, g1)
    g3 = block(w0_3, b0_3, ws_3, bs_3, g2)

    g_ref[...] = g3.astype(g_ref.dtype)
    y = jnp.dot(g3.astype(bf), linw_ref[...],
                preferred_element_type=jnp.float32) + linb_ref[...]
    y_ref[...] = y.astype(y_ref.dtype)


# --------------------------------- JAX wrapper -------------------------------------

def _prepare_operands(params, a_hat, x, batch, num_graphs):
    """Graph-/param-static preprocessing: padding, bf16 casts, pool/one-hot operators.

    Pure function of (params, graph).  Callers that reuse the same graph/params across
    many invocations should jit & cache this separately so the O(N^2) A_hat pad+cast and
    the weight padding are not re-executed per call.
    """
    n, f = x.shape
    h = params["m1"]["w0"].shape[1]
    c = params["lin_w"].shape[1]
    num_layers = params["m1"]["seq_w"].shape[0]
    g = num_graphs

    # Lane (last) dims of MXU outputs / stores / weights stay 128-padded (lane-dense
    # stores); sublane dims only need their dtype tile, so N and G are not inflated.
    np_ = _round_up(n, SUBLANE_BF16)
    fp = _round_up(f, SUBLANE_BF16)
    hp = _round_up(h, LANE)
    cp = _round_up(c, LANE)
    gp = _round_up(g, SUBLANE_F32)

    onehot = (batch[:, None] == jnp.arange(g)[None, :]).astype(jnp.float32)   # [N, G]
    counts = jnp.maximum(onehot.sum(axis=0), 1.0)
    pool = onehot.T / counts[:, None]                                         # [G, N]

    bf = jnp.bfloat16
    args = [
        _pad_to(a_hat, (np_, np_)).astype(bf),
        _pad_to(x, (np_, fp)).astype(bf),
        _pad_to(onehot, (np_, gp)),           # f32 (exact 0/1)
        _pad_to(pool, (gp, np_)),             # f32 (exact 1/count)
    ]
    for k in ("m1", "m2", "m3"):
        p = params[k]
        args.extend([
            _pad_to(p["w0"], (fp, hp)).astype(bf),
            _pad_to(p["b0"], (1, hp)),                            # f32
            _pad_to(p["seq_w"], (num_layers, hp, hp)).astype(bf),
            _pad_to(p["seq_b"], (num_layers, 1, hp)),             # f32
        ])
    args.append(_pad_to(params["lin_w"], (hp, cp)).astype(bf))
    args.append(_pad_to(params["lin_b"], (1, cp)))                # f32

    meta = dict(n=n, f=f, h=h, c=c, g=g, num_layers=num_layers,
                np_=np_, fp=fp, hp=hp, cp=cp, gp=gp)
    return tuple(args), meta


def _vmem_limit_bytes(meta):
    """Scoped-VMEM budget from actual residency: operands + weights + live activations."""
    np_, fp, hp, cp, gp, L = (meta[k] for k in ("np_", "fp", "hp", "cp", "gp", "num_layers"))
    bfb, f32b = 2, 4
    operands = np_ * np_ * bfb + np_ * fp * bfb + np_ * gp * f32b + gp * np_ * f32b
    weights = 3 * (fp * hp * bfb + hp * f32b + L * hp * hp * bfb + L * hp * f32b)
    weights += hp * cp * bfb + cp * f32b
    outs = gp * cp * f32b + gp * hp * f32b
    live_acts = 6 * np_ * hp * f32b + 2 * np_ * fp * f32b   # h / hw / res / relu temps
    total = operands + weights + outs + live_acts
    # 2x headroom for Mosaic temporaries; capped at v7x's 64 MiB per-core VMEM.
    return int(min(64 * 2**20, max(2 * total, 4 * 2**20)))


def _run_fused_kernel(args, meta):
    gp, cp, hp = meta["gp"], meta["cp"], meta["hp"]
    return pl.pallas_call(
        functools.partial(_res_graph_kernel, num_layers=meta["num_layers"]),
        out_shape=(jax.ShapeDtypeStruct((gp, cp), jnp.float32),
                   jax.ShapeDtypeStruct((gp, hp), jnp.float32)),
        in_specs=[VMEM_SPEC] * len(args),
        out_specs=(VMEM_SPEC, VMEM_SPEC),
        compiler_params=pltpu.CompilerParams(
            vmem_limit_bytes=_vmem_limit_bytes(meta)),
    )(*args)


@functools.partial(jax.jit, static_argnames=("num_graphs",))
def res_graph_block_gnn_forward(params, a_hat, x, batch, num_graphs):
    """Full ResGraphBlockGnn.forward (eval mode) in one pallas_call."""
    args, meta = _prepare_operands(params, a_hat, x, batch, num_graphs)
    y_p, g_p = _run_fused_kernel(args, meta)
    return y_p[:meta["g"], :meta["c"]], g_p[:meta["g"], :meta["h"]]


# ------------------------------- Pure-JAX reference --------------------------------

def reference_forward(params, a_hat, x, batch, num_graphs):
    hi = jax.lax.Precision.HIGHEST
    onehot = (batch[:, None] == jnp.arange(num_graphs)[None, :]).astype(jnp.float32)
    counts = jnp.maximum(onehot.sum(axis=0), 1.0)
    pool = onehot.T / counts[:, None]

    def gcn(h, w, b):
        return jnp.dot(a_hat, jnp.dot(h, w, precision=hi), precision=hi) + b

    def block(p, gh):
        h = gcn(x, p["w0"], p["b0"])
        for l in range(p["seq_w"].shape[0]):
            h_in = h if gh is None else h + gh[batch]
            h = jnp.maximum(gcn(h_in, p["seq_w"][l], p["seq_b"][l]), 0.0)
        gm = jnp.dot(pool, h, precision=hi)
        return gm if gh is None else gm + gh

    g = block(params["m1"], None)
    g = block(params["m2"], g)
    g = block(params["m3"], g)
    y = jnp.dot(g, params["lin_w"], precision=hi) + params["lin_b"]
    return y, g


# ------------------------------ Params / graph setup --------------------------------

def init_block_params(key, num_features, hidden, hidden_layer):
    k0, k1, k2, k3 = jax.random.split(key, 4)
    s_in = 1.0 / jnp.sqrt(jnp.float32(num_features))
    s_h = 1.0 / jnp.sqrt(jnp.float32(hidden))
    return {
        "w0": jax.random.normal(k0, (num_features, hidden), jnp.float32) * s_in,
        "b0": jax.random.normal(k1, (1, hidden), jnp.float32) * s_h,
        "seq_w": jax.random.normal(k2, (hidden_layer, hidden, hidden), jnp.float32) * s_h,
        "seq_b": jax.random.normal(k3, (hidden_layer, 1, hidden), jnp.float32) * s_h,
    }
    # NOTE: the inner BlockGNN.lin layers are unused by ResGraphBlockGnn.forward
    # (their outputs are discarded), so they are intentionally not materialized.


def init_res_graph_params(key, num_features, hidden, num_classes, hidden_layer):
    k1, k2, k3, k4, k5 = jax.random.split(key, 5)
    s_h = 1.0 / jnp.sqrt(jnp.float32(hidden))
    return {
        "m1": init_block_params(k1, num_features, hidden, hidden_layer),
        "m2": init_block_params(k2, num_features, hidden, hidden_layer),
        "m3": init_block_params(k3, num_features, hidden, hidden_layer),
        "lin_w": jax.random.normal(k4, (hidden, num_classes), jnp.float32) * s_h,
        "lin_b": jax.random.normal(k5, (1, num_classes), jnp.float32) * s_h,
    }


def build_gcn_adjacency(edge_index, num_nodes):
    """Dense D^{-1/2}(A + I)D^{-1/2} as used by GCNConv (add_self_loops=True).
    Assumes edge_index already contains both directions (undirected graphs)."""
    src, dst = edge_index
    a = jnp.zeros((num_nodes, num_nodes), jnp.float32)
    a = a.at[dst, src].add(1.0)
    a = a + jnp.eye(num_nodes, dtype=jnp.float32)
    deg = a.sum(axis=1)
    dinv = jnp.where(deg > 0, 1.0 / jnp.sqrt(deg), 0.0)
    return dinv[:, None] * a * dinv[None, :]


# --------------------------------------- Main ---------------------------------------

if __name__ == "__main__":
    # Small synthetic dataset: 2 ring graphs of 8 nodes, 8 node features,
    # hidden_channels=32, hidden_layer=2, num_classes=4, model_name='GCNConv'.
    N, F, H, G, C, L = 16, 8, 32, 2, 4, 2

    key = jax.random.PRNGKey(0)
    k_x, k_p = jax.random.split(key)

    x = jax.random.normal(k_x, (N, F), jnp.float32)
    batch = jnp.concatenate([jnp.zeros(8, jnp.int32), jnp.ones(8, jnp.int32)])

    edges = []
    for gi in range(G):
        base = gi * 8
        for i in range(8):
            u, v = base + i, base + (i + 1) % 8
            edges.append((u, v))
            edges.append((v, u))
    edge_index = jnp.array(edges, dtype=jnp.int32).T  # [2, E]

    a_hat = build_gcn_adjacency(edge_index, N)
    params = init_res_graph_params(k_p, F, H, C, L)

    y, g_hidden = res_graph_block_gnn_forward(params, a_hat, x, batch, num_graphs=G)
    jax.block_until_ready((y, g_hidden))

    y_ref, g_ref = reference_forward(params, a_hat, x, batch, G)

    assert y.shape == (G, C) and g_hidden.shape == (G, H)
    assert bool(jnp.all(jnp.isfinite(y))) and bool(jnp.all(jnp.isfinite(g_hidden)))
    # bf16 MXU inputs with f32 accumulation: generous but bug-catching tolerance.
    assert float(jnp.max(jnp.abs(y - y_ref))) < 0.1, "y mismatch vs f32 reference"
    assert float(jnp.max(jnp.abs(g_hidden - g_ref))) < 0.1, "g mismatch vs f32 reference"

    print("KERNEL_OK")
</pallas_src>

<mosaic_0001>
module attributes {stable_mosaic.version = 11 : i64} {
  func.func @_res_graph_kernel(%arg0: memref<16x16xbf16, #tpu.memory_space<vmem>>, %arg1: memref<16x16xbf16, #tpu.memory_space<vmem>>, %arg2: memref<16x8xf32, #tpu.memory_space<vmem>>, %arg3: memref<8x16xf32, #tpu.memory_space<vmem>>, %arg4: memref<16x128xbf16, #tpu.memory_space<vmem>>, %arg5: memref<1x128xf32, #tpu.memory_space<vmem>>, %arg6: memref<2x128x128xbf16, #tpu.memory_space<vmem>>, %arg7: memref<2x1x128xf32, #tpu.memory_space<vmem>>, %arg8: memref<16x128xbf16, #tpu.memory_space<vmem>>, %arg9: memref<1x128xf32, #tpu.memory_space<vmem>>, %arg10: memref<2x128x128xbf16, #tpu.memory_space<vmem>>, %arg11: memref<2x1x128xf32, #tpu.memory_space<vmem>>, %arg12: memref<16x128xbf16, #tpu.memory_space<vmem>>, %arg13: memref<1x128xf32, #tpu.memory_space<vmem>>, %arg14: memref<2x128x128xbf16, #tpu.memory_space<vmem>>, %arg15: memref<2x1x128xf32, #tpu.memory_space<vmem>>, %arg16: memref<128x128xbf16, #tpu.memory_space<vmem>>, %arg17: memref<1x128xf32, #tpu.memory_space<vmem>>, %arg18: memref<8x128xf32, #tpu.memory_space<vmem>>, %arg19: memref<8x128xf32, #tpu.memory_space<vmem>>) attributes {dimension_semantics = [], scalar_prefetch = 0 : i64, scratch_operands = 0 : i64, tpu.core_type = #tpu.core_type<tc>} {
    %c0 = arith.constant 0 : index
    %c0_0 = arith.constant 0 : index
    %0 = vector.load %arg0[%c0, %c0_0] : memref<16x16xbf16, #tpu.memory_space<vmem>>, vector<16x16xbf16>
    %c0_1 = arith.constant 0 : index
    %c0_2 = arith.constant 0 : index
    %1 = vector.load %arg2[%c0_1, %c0_2] : memref<16x8xf32, #tpu.memory_space<vmem>>, vector<16x8xf32>
    %c0_3 = arith.constant 0 : index
    %c0_4 = arith.constant 0 : index
    %2 = vector.load %arg3[%c0_3, %c0_4] : memref<8x16xf32, #tpu.memory_space<vmem>>, vector<8x16xf32>
    %c0_5 = arith.constant 0 : index
    %c0_6 = arith.constant 0 : index
    %3 = vector.load %arg1[%c0_5, %c0_6] : memref<16x16xbf16, #tpu.memory_space<vmem>>, vector<16x16xbf16>
    %cst = arith.constant dense<0.000000e+00> : vector<16x16xf32>
    %4 = tpu.matmul %0, %3, %cst {dimension_numbers = #tpu.dot_dimension_numbers<[1], [0], [0], [1], [0, 0, 1, 1], [], []>} : vector<16x16xbf16>, vector<16x16xbf16>, vector<16x16xf32> -> vector<16x16xf32>
    %5 = arith.truncf %4 : vector<16x16xf32> to vector<16x16xbf16>
    %c0_7 = arith.constant 0 : index
    %c0_8 = arith.constant 0 : index
    %6 = vector.load %arg4[%c0_7, %c0_8] : memref<16x128xbf16, #tpu.memory_space<vmem>>, vector<16x128xbf16>
    %cst_9 = arith.constant dense<0.000000e+00> : vector<16x128xf32>
    %7 = tpu.matmul %5, %6, %cst_9 {dimension_numbers = #tpu.dot_dimension_numbers<[1], [0], [0], [1], [0, 0, 1, 1], [], []>} : vector<16x16xbf16>, vector<16x128xbf16>, vector<16x128xf32> -> vector<16x128xf32>
    %c0_10 = arith.constant 0 : index
    %c0_11 = arith.constant 0 : index
    %8 = vector.load %arg5[%c0_10, %c0_11] : memref<1x128xf32, #tpu.memory_space<vmem>>, vector<1x128xf32>
    %9 = vector.broadcast %8 : vector<1x128xf32> to vector<16x128xf32>
    %10 = arith.addf %7, %9 : vector<16x128xf32>
    %11 = arith.truncf %10 : vector<16x128xf32> to vector<16x128xbf16>
    %c0_12 = arith.constant 0 : index
    %c0_13 = arith.constant 0 : index
    %c0_14 = arith.constant 0 : index
    %12 = vector.load %arg6[%c0_12, %c0_13, %c0_14] : memref<2x128x128xbf16, #tpu.memory_space<vmem>>, vector<1x128x128xbf16>
    %13 = vector.shape_cast %12 : vector<1x128x128xbf16> to vector<128x128xbf16>
    %cst_15 = arith.constant dense<0.000000e+00> : vector<16x128xf32>
    %14 = tpu.matmul %11, %13, %cst_15 {dimension_numbers = #tpu.dot_dimension_numbers<[1], [0], [0], [1], [0, 0, 1, 1], [], []>} : vector<16x128xbf16>, vector<128x128xbf16>, vector<16x128xf32> -> vector<16x128xf32>
    %15 = arith.truncf %14 : vector<16x128xf32> to vector<16x128xbf16>
    %cst_16 = arith.constant dense<0.000000e+00> : vector<16x128xf32>
    %16 = tpu.matmul %0, %15, %cst_16 {dimension_numbers = #tpu.dot_dimension_numbers<[1], [0], [0], [1], [0, 0, 1, 1], [], []>} : vector<16x16xbf16>, vector<16x128xbf16>, vector<16x128xf32> -> vector<16x128xf32>
    %c0_17 = arith.constant 0 : index
    %c0_18 = arith.constant 0 : index
    %c0_19 = arith.constant 0 : index
    %17 = vector.load %arg7[%c0_17, %c0_18, %c0_19] : memref<2x1x128xf32, #tpu.memory_space<vmem>>, vector<1x1x128xf32>
    %18 = vector.shape_cast %17 : vector<1x1x128xf32> to vector<1x128xf32>
    %19 = vector.broadcast %18 : vector<1x128xf32> to vector<16x128xf32>
    %20 = arith.addf %16, %19 : vector<16x128xf32>
    %cst_20 = arith.constant 0.000000e+00 : f32
    %21 = vector.broadcast %cst_20 : f32 to vector<16x128xf32>
    %22 = arith.maximumf %20, %21 : vector<16x128xf32>
    %23 = arith.truncf %22 : vector<16x128xf32> to vector<16x128xbf16>
    %c1 = arith.constant 1 : index
    %c0_21 = arith.constant 0 : index
    %c0_22 = arith.constant 0 : index
    %24 = vector.load %arg6[%c1, %c0_21, %c0_22] : memref<2x128x128xbf16, #tpu.memory_space<vmem>>, vector<1x128x128xbf16>
    %25 = vector.shape_cast %24 : vector<1x128x128xbf16> to vector<128x128xbf16>
    %cst_23 = arith.constant dense<0.000000e+00> : vector<16x128xf32>
    %26 = tpu.matmul %23, %25, %cst_23 {dimension_numbers = #tpu.dot_dimension_numbers<[1], [0], [0], [1], [0, 0, 1, 1], [], []>} : vector<16x128xbf16>, vector<128x128xbf16>, vector<16x128xf32> -> vector<16x128xf32>
    %27 = arith.truncf %26 : vector<16x128xf32> to vector<16x128xbf16>
    %cst_24 = arith.constant dense<0.000000e+00> : vector<16x128xf32>
    %28 = tpu.matmul %0, %27, %cst_24 {dimension_numbers = #tpu.dot_dimension_numbers<[1], [0], [0], [1], [0, 0, 1, 1], [], []>} : vector<16x16xbf16>, vector<16x128xbf16>, vector<16x128xf32> -> vector<16x128xf32>
    %c1_25 = arith.constant 1 : index
    %c0_26 = arith.constant 0 : index
    %c0_27 = arith.constant 0 : index
    %29 = vector.load %arg7[%c1_25, %c0_26, %c0_27] : memref<2x1x128xf32, #tpu.memory_space<vmem>>, vector<1x1x128xf32>
    %30 = vector.shape_cast %29 : vector<1x1x128xf32> to vector<1x128xf32>
    %31 = vector.broadcast %30 : vector<1x128xf32> to vector<16x128xf32>
    %32 = arith.addf %28, %31 : vector<16x128xf32>
    %cst_28 = arith.constant 0.000000e+00 : f32
    %33 = vector.broadcast %cst_28 : f32 to vector<16x128xf32>
    %34 = arith.maximumf %32, %33 : vector<16x128xf32>
    %cst_29 = arith.constant dense<0.000000e+00> : vector<8x128xf32>
    %35 = tpu.matmul %2, %34, %cst_29 {dimension_numbers = #tpu.dot_dimension_numbers<[1], [0], [0], [1], [0, 0, 1, 1], [], []>} : vector<8x16xf32>, vector<16x128xf32>, vector<8x128xf32> -> vector<8x128xf32>
    %c0_30 = arith.constant 0 : index
    %c0_31 = arith.constant 0 : index
    %36 = vector.load %arg8[%c0_30, %c0_31] : memref<16x128xbf16, #tpu.memory_space<vmem>>, vector<16x128xbf16>
    %cst_32 = arith.constant dense<0.000000e+00> : vector<16x128xf32>
    %37 = tpu.matmul %5, %36, %cst_32 {dimension_numbers = #tpu.dot_dimension_numbers<[1], [0], [0], [1], [0, 0, 1, 1], [], []>} : vector<16x16xbf16>, vector<16x128xbf16>, vector<16x128xf32> -> vector<16x128xf32>
    %c0_33 = arith.constant 0 : index
    %c0_34 = arith.constant 0 : index
    %38 = vector.load %arg9[%c0_33, %c0_34] : memref<1x128xf32, #tpu.memory_space<vmem>>, vector<1x128xf32>
    %39 = vector.broadcast %38 : vector<1x128xf32> to vector<16x128xf32>
    %40 = arith.addf %37, %39 : vector<16x128xf32>
    %cst_35 = arith.constant dense<0.000000e+00> : vector<16x128xf32>
    %41 = tpu.matmul %1, %35, %cst_35 {dimension_numbers = #tpu.dot_dimension_numbers<[1], [0], [0], [1], [0, 0, 1, 1], [], []>} : vector<16x8xf32>, vector<8x128xf32>, vector<16x128xf32> -> vector<16x128xf32>
    %42 = arith.addf %40, %41 : vector<16x128xf32>
    %43 = arith.truncf %42 : vector<16x128xf32> to vector<16x128xbf16>
    %c0_36 = arith.constant 0 : index
    %c0_37 = arith.constant 0 : index
    %c0_38 = arith.constant 0 : index
    %44 = vector.load %arg10[%c0_36, %c0_37, %c0_38] : memref<2x128x128xbf16, #tpu.memory_space<vmem>>, vector<1x128x128xbf16>
    %45 = vector.shape_cast %44 : vector<1x128x128xbf16> to vector<128x128xbf16>
    %cst_39 = arith.constant dense<0.000000e+00> : vector<16x128xf32>
    %46 = tpu.matmul %43, %45, %cst_39 {dimension_numbers = #tpu.dot_dimension_numbers<[1], [0], [0], [1], [0, 0, 1, 1], [], []>} : vector<16x128xbf16>, vector<128x128xbf16>, vector<16x128xf32> -> vector<16x128xf32>
    %47 = arith.truncf %46 : vector<16x128xf32> to vector<16x128xbf16>
    %cst_40 = arith.constant dense<0.000000e+00> : vector<16x128xf32>
    %48 = tpu.matmul %0, %47, %cst_40 {dimension_numbers = #tpu.dot_dimension_numbers<[1], [0], [0], [1], [0, 0, 1, 1], [], []>} : vector<16x16xbf16>, vector<16x128xbf16>, vector<16x128xf32> -> vector<16x128xf32>
    %c0_41 = arith.constant 0 : index
    %c0_42 = arith.constant 0 : index
    %c0_43 = arith.constant 0 : index
    %49 = vector.load %arg11[%c0_41, %c0_42, %c0_43] : memref<2x1x128xf32, #tpu.memory_space<vmem>>, vector<1x1x128xf32>
    %50 = vector.shape_cast %49 : vector<1x1x128xf32> to vector<1x128xf32>
    %51 = vector.broadcast %50 : vector<1x128xf32> to vector<16x128xf32>
    %52 = arith.addf %48, %51 : vector<16x128xf32>
    %cst_44 = arith.constant 0.000000e+00 : f32
    %53 = vector.broadcast %cst_44 : f32 to vector<16x128xf32>
    %54 = arith.maximumf %52, %53 : vector<16x128xf32>
    %55 = arith.addf %54, %41 : vector<16x128xf32>
    %56 = arith.truncf %55 : vector<16x128xf32> to vector<16x128xbf16>
    %c1_45 = arith.constant 1 : index
    %c0_46 = arith.constant 0 : index
    %c0_47 = arith.constant 0 : index
    %57 = vector.load %arg10[%c1_45, %c0_46, %c0_47] : memref<2x128x128xbf16, #tpu.memory_space<vmem>>, vector<1x128x128xbf16>
    %58 = vector.shape_cast %57 : vector<1x128x128xbf16> to vector<128x128xbf16>
    %cst_48 = arith.constant dense<0.000000e+00> : vector<16x128xf32>
    %59 = tpu.matmul %56, %58, %cst_48 {dimension_numbers = #tpu.dot_dimension_numbers<[1], [0], [0], [1], [0, 0, 1, 1], [], []>} : vector<16x128xbf16>, vector<128x128xbf16>, vector<16x128xf32> -> vector<16x128xf32>
    %60 = arith.truncf %59 : vector<16x128xf32> to vector<16x128xbf16>
    %cst_49 = arith.constant dense<0.000000e+00> : vector<16x128xf32>
    %61 = tpu.matmul %0, %60, %cst_49 {dimension_numbers = #tpu.dot_dimension_numbers<[1], [0], [0], [1], [0, 0, 1, 1], [], []>} : vector<16x16xbf16>, vector<16x128xbf16>, vector<16x128xf32> -> vector<16x128xf32>
    %c1_50 = arith.constant 1 : index
    %c0_51 = arith.constant 0 : index
    %c0_52 = arith.constant 0 : index
    %62 = vector.load %arg11[%c1_50, %c0_51, %c0_52] : memref<2x1x128xf32, #tpu.memory_space<vmem>>, vector<1x1x128xf32>
    %63 = vector.shape_cast %62 : vector<1x1x128xf32> to vector<1x128xf32>
    %64 = vector.broadcast %63 : vector<1x128xf32> to vector<16x128xf32>
    %65 = arith.addf %61, %64 : vector<16x128xf32>
    %cst_53 = arith.constant 0.000000e+00 : f32
    %66 = vector.broadcast %cst_53 : f32 to vector<16x128xf32>
    %67 = arith.maximumf %65, %66 : vector<16x128xf32>
    %cst_54 = arith.constant dense<0.000000e+00> : vector<8x128xf32>
    %68 = tpu.matmul %2, %67, %cst_54 {dimension_numbers = #tpu.dot_dimension_numbers<[1], [0], [0], [1], [0, 0, 1, 1], [], []>} : vector<8x16xf32>, vector<16x128xf32>, vector<8x128xf32> -> vector<8x128xf32>
    %69 = arith.addf %68, %35 : vector<8x128xf32>
    %c0_55 = arith.constant 0 : index
    %c0_56 = arith.constant 0 : index
    %70 = vector.load %arg12[%c0_55, %c0_56] : memref<16x128xbf16, #tpu.memory_space<vmem>>, vector<16x128xbf16>
    %cst_57 = arith.constant dense<0.000000e+00> : vector<16x128xf32>
    %71 = tpu.matmul %5, %70, %cst_57 {dimension_numbers = #tpu.dot_dimension_numbers<[1], [0], [0], [1], [0, 0, 1, 1], [], []>} : vector<16x16xbf16>, vector<16x128xbf16>, vector<16x128xf32> -> vector<16x128xf32>
    %c0_58 = arith.constant 0 : index
    %c0_59 = arith.constant 0 : index
    %72 = vector.load %arg13[%c0_58, %c0_59] : memref<1x128xf32, #tpu.memory_space<vmem>>, vector<1x128xf32>
    %73 = vector.broadcast %72 : vector<1x128xf32> to vector<16x128xf32>
    %74 = arith.addf %71, %73 : vector<16x128xf32>
    %cst_60 = arith.constant dense<0.000000e+00> : vector<16x128xf32>
    %75 = tpu.matmul %1, %69, %cst_60 {dimension_numbers = #tpu.dot_dimension_numbers<[1], [0], [0], [1], [0, 0, 1, 1], [], []>} : vector<16x8xf32>, vector<8x128xf32>, vector<16x128xf32> -> vector<16x128xf32>
    %76 = arith.addf %74, %75 : vector<16x128xf32>
    %77 = arith.truncf %76 : vector<16x128xf32> to vector<16x128xbf16>
    %c0_61 = arith.constant 0 : index
    %c0_62 = arith.constant 0 : index
    %c0_63 = arith.constant 0 : index
    %78 = vector.load %arg14[%c0_61, %c0_62, %c0_63] : memref<2x128x128xbf16, #tpu.memory_space<vmem>>, vector<1x128x128xbf16>
    %79 = vector.shape_cast %78 : vector<1x128x128xbf16> to vector<128x128xbf16>
    %cst_64 = arith.constant dense<0.000000e+00> : vector<16x128xf32>
    %80 = tpu.matmul %77, %79, %cst_64 {dimension_numbers = #tpu.dot_dimension_numbers<[1], [0], [0], [1], [0, 0, 1, 1], [], []>} : vector<16x128xbf16>, vector<128x128xbf16>, vector<16x128xf32> -> vector<16x128xf32>
    %81 = arith.truncf %80 : vector<16x128xf32> to vector<16x128xbf16>
    %cst_65 = arith.constant dense<0.000000e+00> : vector<16x128xf32>
    %82 = tpu.matmul %0, %81, %cst_65 {dimension_numbers = #tpu.dot_dimension_numbers<[1], [0], [0], [1], [0, 0, 1, 1], [], []>} : vector<16x16xbf16>, vector<16x128xbf16>, vector<16x128xf32> -> vector<16x128xf32>
    %c0_66 = arith.constant 0 : index
    %c0_67 = arith.constant 0 : index
    %c0_68 = arith.constant 0 : index
    %83 = vector.load %arg15[%c0_66, %c0_67, %c0_68] : memref<2x1x128xf32, #tpu.memory_space<vmem>>, vector<1x1x128xf32>
    %84 = vector.shape_cast %83 : vector<1x1x128xf32> to vector<1x128xf32>
    %85 = vector.broadcast %84 : vector<1x128xf32> to vector<16x128xf32>
    %86 = arith.addf %82, %85 : vector<16x128xf32>
    %cst_69 = arith.constant 0.000000e+00 : f32
    %87 = vector.broadcast %cst_69 : f32 to vector<16x128xf32>
    %88 = arith.maximumf %86, %87 : vector<16x128xf32>
    %89 = arith.addf %88, %75 : vector<16x128xf32>
    %90 = arith.truncf %89 : vector<16x128xf32> to vector<16x128xbf16>
    %c1_70 = arith.constant 1 : index
    %c0_71 = arith.constant 0 : index
    %c0_72 = arith.constant 0 : index
    %91 = vector.load %arg14[%c1_70, %c0_71, %c0_72] : memref<2x128x128xbf16, #tpu.memory_space<vmem>>, vector<1x128x128xbf16>
    %92 = vector.shape_cast %91 : vector<1x128x128xbf16> to vector<128x128xbf16>
    %cst_73 = arith.constant dense<0.000000e+00> : vector<16x128xf32>
    %93 = tpu.matmul %90, %92, %cst_73 {dimension_numbers = #tpu.dot_dimension_numbers<[1], [0], [0], [1], [0, 0, 1, 1], [], []>} : vector<16x128xbf16>, vector<128x128xbf16>, vector<16x128xf32> -> vector<16x128xf32>
    %94 = arith.truncf %93 : vector<16x128xf32> to vector<16x128xbf16>
    %cst_74 = arith.constant dense<0.000000e+00> : vector<16x128xf32>
    %95 = tpu.matmul %0, %94, %cst_74 {dimension_numbers = #tpu.dot_dimension_numbers<[1], [0], [0], [1], [0, 0, 1, 1], [], []>} : vector<16x16xbf16>, vector<16x128xbf16>, vector<16x128xf32> -> vector<16x128xf32>
    %c1_75 = arith.constant 1 : index
    %c0_76 = arith.constant 0 : index
    %c0_77 = arith.constant 0 : index
    %96 = vector.load %arg15[%c1_75, %c0_76, %c0_77] : memref<2x1x128xf32, #tpu.memory_space<vmem>>, vector<1x1x128xf32>
    %97 = vector.shape_cast %96 : vector<1x1x128xf32> to vector<1x128xf32>
    %98 = vector.broadcast %97 : vector<1x128xf32> to vector<16x128xf32>
    %99 = arith.addf %95, %98 : vector<16x128xf32>
    %cst_78 = arith.constant 0.000000e+00 : f32
    %100 = vector.broadcast %cst_78 : f32 to vector<16x128xf32>
    %101 = arith.maximumf %99, %100 : vector<16x128xf32>
    %cst_79 = arith.constant dense<0.000000e+00> : vector<8x128xf32>
    %102 = tpu.matmul %2, %101, %cst_79 {dimension_numbers = #tpu.dot_dimension_numbers<[1], [0], [0], [1], [0, 0, 1, 1], [], []>} : vector<8x16xf32>, vector<16x128xf32>, vector<8x128xf32> -> vector<8x128xf32>
    %103 = arith.addf %102, %69 : vector<8x128xf32>
    %c0_80 = arith.constant 0 : index
    %c0_81 = arith.constant 0 : index
    %104 = vector.load %arg19[%c0_80, %c0_81] : memref<8x128xf32, #tpu.memory_space<vmem>>, vector<8x128xf32>
    tpu.vector_store %arg19[%c0_80, %c0_81], %103 {strides = array<i32>} : memref<8x128xf32, #tpu.memory_space<vmem>>, vector<8x128xf32>,
    %105 = arith.truncf %103 : vector<8x128xf32> to vector<8x128xbf16>
    %c0_82 = arith.constant 0 : index
    %c0_83 = arith.constant 0 : index
    %106 = vector.load %arg16[%c0_82, %c0_83] : memref<128x128xbf16, #tpu.memory_space<vmem>>, vector<128x128xbf16>
    %cst_84 = arith.constant dense<0.000000e+00> : vector<8x128xf32>
    %107 = tpu.matmul %105, %106, %cst_84 {dimension_numbers = #tpu.dot_dimension_numbers<[1], [0], [0], [1], [0, 0, 1, 1], [], []>} : vector<8x128xbf16>, vector<128x128xbf16>, vector<8x128xf32> -> vector<8x128xf32>
    %c0_85 = arith.constant 0 : index
    %c0_86 = arith.constant 0 : index
    %108 = vector.load %arg17[%c0_85, %c0_86] : memref<1x128xf32, #tpu.memory_space<vmem>>, vector<1x128xf32>
    %109 = vector.broadcast %108 : vector<1x128xf32> to vector<8x128xf32>
    %110 = arith.addf %107, %109 : vector<8x128xf32>
    %c0_87 = arith.constant 0 : index
    %c0_88 = arith.constant 0 : index
    %111 = vector.load %arg18[%c0_87, %c0_88] : memref<8x128xf32, #tpu.memory_space<vmem>>, vector<8x128xf32>
    tpu.vector_store %arg18[%c0_87, %c0_88], %110 {strides = array<i32>} : memref<8x128xf32, #tpu.memory_space<vmem>>, vector<8x128xf32>,
    return
  }
}

</mosaic_0001>

<llo_original>
// kernel: res_graph_block_gnn_forward.1
$region0: #{res_graph_block_gnn_forward.1}
  #allocation0 [shape = 'u32[]', space=smem, size = 0x4, offset = 0x4, fixed_abs, tag = 'smem constant byte address 0x4 - core index']
  #allocation1 [shape = 'u32[72,128]{1,0:T(1,128)}', space=vmem, size = 0x9000, scoped, tag = 'internal scratch']
  %s0 = inlined_call_operand.vmem [shape: bf16[16,16], index: 0, kind: input, shape index: {}]
  %s1 = inlined_call_operand.vmem [shape: bf16[16,16], index: 1, kind: input, shape index: {}]
  %s2 = inlined_call_operand.vmem [shape: f32[16,8], index: 2, kind: input, shape index: {}]
  %s3 = inlined_call_operand.vmem [shape: f32[8,16], index: 3, kind: input, shape index: {}]
  %s4 = inlined_call_operand.vmem [shape: bf16[16,128], index: 4, kind: input, shape index: {}]
  %s5 = inlined_call_operand.vmem [shape: f32[1,128], index: 5, kind: input, shape index: {}]
  %s6 = inlined_call_operand.vmem [shape: bf16[2,128,128], index: 6, kind: input, shape index: {}]
  %s7 = inlined_call_operand.vmem [shape: f32[2,1,128], index: 7, kind: input, shape index: {}]
  %s8 = inlined_call_operand.vmem [shape: bf16[16,128], index: 8, kind: input, shape index: {}]
  %s9 = inlined_call_operand.vmem [shape: f32[1,128], index: 9, kind: input, shape index: {}]
  %s10 = inlined_call_operand.vmem [shape: bf16[2,128,128], index: 10, kind: input, shape index: {}]
  %s11 = inlined_call_operand.vmem [shape: f32[2,1,128], index: 11, kind: input, shape index: {}]
  %s12 = inlined_call_operand.vmem [shape: bf16[16,128], index: 12, kind: input, shape index: {}]
  %s13 = inlined_call_operand.vmem [shape: f32[1,128], index: 13, kind: input, shape index: {}]
  %s14 = inlined_call_operand.vmem [shape: bf16[2,128,128], index: 14, kind: input, shape index: {}]
  %s15 = inlined_call_operand.vmem [shape: f32[2,1,128], index: 15, kind: input, shape index: {}]
  %s16 = inlined_call_operand.vmem [shape: bf16[128,128], index: 16, kind: input, shape index: {}]
  %s17 = inlined_call_operand.vmem [shape: f32[1,128], index: 17, kind: input, shape index: {}]
  %s18 = inlined_call_operand.vmem [shape: f32[8,128], index: 18, kind: output, shape index: {0}]
  %s19 = inlined_call_operand.vmem [shape: f32[8,128], index: 19, kind: output, shape index: {1}]
  %20 = xla_tuple %s18, %s19
  %s21 = sld [smem:[#allocation0]]
  $region90: #{res_graph_block_gnn_forward.1} parent=0
    _
  %s23 = ssub.s32 1, %s21
  %s24 = scalar_select 0, %s23, %s21
  // Predicated region
  $region2: #{res_graph_block_gnn_forward.1} parent=0 // pred_check
    _
  $region3: #{res_graph_block_gnn_forward.1} parent=0 // pred_check_branch
    %26 = sbr.rel (0) target = $region5
  $region4: #{res_graph_block_gnn_forward.1} parent=0 // pred_region
    _
  $region5: #{res_graph_block_gnn_forward.1} parent=0 // pred_fallthru
    _
  // Predicated region
  $region6: #{res_graph_block_gnn_forward.1} parent=0 // pred_check
    _
  $region7: #{res_graph_block_gnn_forward.1} parent=0 // pred_check_branch
    %28 = sbr.rel (0) target = $region9
  $region8: #{res_graph_block_gnn_forward.1} parent=0 // pred_region
    _
  $region9: #{res_graph_block_gnn_forward.1} parent=0 // pred_fallthru
    _
  // Predicated region
  $region10: #{res_graph_block_gnn_forward.1} parent=0 // pred_check
    _
  $region11: #{res_graph_block_gnn_forward.1} parent=0 // pred_check_branch
    %30 = sbr.rel (0) target = $region13
  $region12: #{res_graph_block_gnn_forward.1} parent=0 // pred_region
    _
  $region13: #{res_graph_block_gnn_forward.1} parent=0 // pred_fallthru
    _
  // Predicated region
  $region14: #{res_graph_block_gnn_forward.1} parent=0 // pred_check
    _
  $region15: #{res_graph_block_gnn_forward.1} parent=0 // pred_check_branch
    %32 = sbr.rel (0) target = $region17
  $region16: #{res_graph_block_gnn_forward.1} parent=0 // pred_region
    _
  $region17: #{res_graph_block_gnn_forward.1} parent=0 // pred_fallthru
    _
  // Predicated region
  $region18: #{res_graph_block_gnn_forward.1} parent=0 // pred_check
    _
  $region19: #{res_graph_block_gnn_forward.1} parent=0 // pred_check_branch
    %34 = sbr.rel (0) target = $region21
  $region20: #{res_graph_block_gnn_forward.1} parent=0 // pred_region
    _
  $region21: #{res_graph_block_gnn_forward.1} parent=0 // pred_fallthru
    _
  // Predicated region
  $region22: #{res_graph_block_gnn_forward.1} parent=0 // pred_check
    _
  $region23: #{res_graph_block_gnn_forward.1} parent=0 // pred_check_branch
    %36 = sbr.rel (0) target = $region25
  $region24: #{res_graph_block_gnn_forward.1} parent=0 // pred_region
    _
  $region25: #{res_graph_block_gnn_forward.1} parent=0 // pred_fallthru
    _
  // Predicated region
  $region26: #{res_graph_block_gnn_forward.1} parent=0 // pred_check
    _
  $region27: #{res_graph_block_gnn_forward.1} parent=0 // pred_check_branch
    %38 = sbr.rel (0) target = $region29
  $region28: #{res_graph_block_gnn_forward.1} parent=0 // pred_region
    _
  $region29: #{res_graph_block_gnn_forward.1} parent=0 // pred_fallthru
    _
  // Predicated region
  $region30: #{res_graph_block_gnn_forward.1} parent=0 // pred_check
    _
  $region31: #{res_graph_block_gnn_forward.1} parent=0 // pred_check_branch
    %40 = sbr.rel (0) target = $region33
  $region32: #{res_graph_block_gnn_forward.1} parent=0 // pred_region
    _
  $region33: #{res_graph_block_gnn_forward.1} parent=0 // pred_fallthru
    _
  // Predicated region
  $region34: #{res_graph_block_gnn_forward.1} parent=0 // pred_check
    _
  $region35: #{res_graph_block_gnn_forward.1} parent=0 // pred_check_branch
    %42 = sbr.rel (0) target = $region37
  $region36: #{res_graph_block_gnn_forward.1} parent=0 // pred_region
    _
  $region37: #{res_graph_block_gnn_forward.1} parent=0 // pred_fallthru
    _
  // Predicated region
  $region38: #{res_graph_block_gnn_forward.1} parent=0 // pred_check
    _
  $region39: #{res_graph_block_gnn_forward.1} parent=0 // pred_check_branch
    %44 = sbr.rel (0) target = $region41
  $region40: #{res_graph_block_gnn_forward.1} parent=0 // pred_region
    _
  $region41: #{res_graph_block_gnn_forward.1} parent=0 // pred_fallthru
    _
  // Predicated region
  $region42: #{res_graph_block_gnn_forward.1} parent=0 // pred_check
    _
  $region43: #{res_graph_block_gnn_forward.1} parent=0 // pred_check_branch
    %46 = sbr.rel (0) target = $region45
  $region44: #{res_graph_block_gnn_forward.1} parent=0 // pred_region
    _
  $region45: #{res_graph_block_gnn_forward.1} parent=0 // pred_fallthru
    _
  // Predicated region
  $region46: #{res_graph_block_gnn_forward.1} parent=0 // pred_check
    _
  $region47: #{res_graph_block_gnn_forward.1} parent=0 // pred_check_branch
    %48 = sbr.rel (0) target = $region49
  $region48: #{res_graph_block_gnn_forward.1} parent=0 // pred_region
    _
  $region49: #{res_graph_block_gnn_forward.1} parent=0 // pred_fallthru
    _
  // Predicated region
  $region50: #{res_graph_block_gnn_forward.1} parent=0 // pred_check
    _
  $region51: #{res_graph_block_gnn_forward.1} parent=0 // pred_check_branch
    %50 = sbr.rel (0) target = $region53
  $region52: #{res_graph_block_gnn_forward.1} parent=0 // pred_region
    _
  $region53: #{res_graph_block_gnn_forward.1} parent=0 // pred_fallthru
    _
  // Predicated region
  $region54: #{res_graph_block_gnn_forward.1} parent=0 // pred_check
    _
  $region55: #{res_graph_block_gnn_forward.1} parent=0 // pred_check_branch
    %52 = sbr.rel (0) target = $region57
  $region56: #{res_graph_block_gnn_forward.1} parent=0 // pred_region
    _
  $region57: #{res_graph_block_gnn_forward.1} parent=0 // pred_fallthru
    _
  // Predicated region
  $region58: #{res_graph_block_gnn_forward.1} parent=0 // pred_check
    _
  $region59: #{res_graph_block_gnn_forward.1} parent=0 // pred_check_branch
    %54 = sbr.rel (0) target = $region61
  $region60: #{res_graph_block_gnn_forward.1} parent=0 // pred_region
    _
  $region61: #{res_graph_block_gnn_forward.1} parent=0 // pred_fallthru
    _
  // Predicated region
  $region62: #{res_graph_block_gnn_forward.1} parent=0 // pred_check
    _
  $region63: #{res_graph_block_gnn_forward.1} parent=0 // pred_check_branch
    %56 = sbr.rel (0) target = $region65
  $region64: #{res_graph_block_gnn_forward.1} parent=0 // pred_region
    _
  $region65: #{res_graph_block_gnn_forward.1} parent=0 // pred_fallthru
    _
  // Predicated region
  $region66: #{res_graph_block_gnn_forward.1} parent=0 // pred_check
    _
  $region67: #{res_graph_block_gnn_forward.1} parent=0 // pred_check_branch
    %58 = sbr.rel (0) target = $region69
  $region68: #{res_graph_block_gnn_forward.1} parent=0 // pred_region
    _
  $region69: #{res_graph_block_gnn_forward.1} parent=0 // pred_fallthru
    _
  // Predicated region
  $region70: #{res_graph_block_gnn_forward.1} parent=0 // pred_check
    _
  $region71: #{res_graph_block_gnn_forward.1} parent=0 // pred_check_branch
    %60 = sbr.rel (0) target = $region73
  $region72: #{res_graph_block_gnn_forward.1} parent=0 // pred_region
    _
  $region73: #{res_graph_block_gnn_forward.1} parent=0 // pred_fallthru
    _
  %v62 = vld [vmem:[%s0] sm:$0xf]
  %v63 = vld [vmem:[%s0 + $0x4] sm:$0xf]
  %v64 = vld [vmem:[%s2] sm:$0xff]
  %v65 = vld [vmem:[%s2 + $0x8] sm:$0xff]
  %v66 = vld [vmem:[%s3] sm:$0xff]
  %v67 = vld [vmem:[%s1] sm:$0xf]
  %v68 = vld [vmem:[%s1 + $0x4] sm:$0xf]
  %v71 = vunpack.c.l.b16 %v62
  %v72 = vunpack.c.l.b16 %v63
  %v73 = vpack.c.b16 %v72, %v71
  %v76 = vunpack.c.l.b16 %v67
  %v77 = vunpack.c.l.b16 %v68
  %v78 = vpack.c.b16 %v77, %v76
  %vm80 = vcmask 130048
  %v82 = vsel %vm80, %v73, 0
  %84 = vmatpush.bf16.msra.mxu0 0
  %85 = vmatpush.bf16.msra.mxu0 0
  %86 = vmatpush.bf16.msra.mxu0 0
  %87 = vmatpush.bf16.msra.mxu0 0
  %88 = vmatpush.bf16.msra.mxu0 0
  %89 = vmatpush.bf16.msra.mxu0 0
  %90 = vmatpush.bf16.msra.mxu0 0
  %91 = vmatpush.bf16.msra.mxu0 %v78
  %92 = vmatmul.bf16.gmra.mxu0 %v82
  %v93 = vpop.f32.mrf.mxu0
  %v94 = vadd.f32 0.0, %v93
  %v95 = vpop.f32.mrf.mxu0
  %v96 = vadd.f32 0.0, %v95
  %97 = vdwg.mxu0
  %v98 = vpack.c.bf16 %v96, %v94
  %v99 = vld [vmem:[%s4] sm:$0xf]
  %v100 = vld [vmem:[%s4 + $0x4] sm:$0xf]
  %v101 = vld [vmem:[%s5] sm:$0x1]
  %v103 = vperm.slane %v101, 0
  %v107 = vunpack.c.l.b16 %v99
  %v108 = vunpack.c.l.b16 %v100
  %v109 = vpack.c.b16 %v108, %v107
  %v112 = vsel %vm80, %v98, 0
  %114 = vmatpush.bf16.msra.mxu0 0
  %115 = vmatpush.bf16.msra.mxu0 0
  %116 = vmatpush.bf16.msra.mxu0 0
  %117 = vmatpush.bf16.msra.mxu0 0
  %118 = vmatpush.bf16.msra.mxu0 0
  %119 = vmatpush.bf16.msra.mxu0 0
  %120 = vmatpush.bf16.msra.mxu0 0
  %121 = vmatpush.bf16.msra.mxu0 %v109
  %122 = vmatmul.bf16.gmra.mxu0 %v112
  %v123 = vpop.f32.mrf.mxu0
  %v124 = vadd.f32 %v103, %v123
  %v125 = vpop.f32.mrf.mxu0
  %v126 = vadd.f32 %v103, %v125
  %127 = vdwg.mxu0
  %v128 = vpack.c.bf16 %v126, %v124
  %v129 = vld [vmem:[%s6] sm:$0xf]
  %v130 = vld [vmem:[%s6 + $0x4] sm:$0xf]
  %v131 = vld [vmem:[%s6 + $0x8] sm:$0xf]
  %v132 = vld [vmem:[%s6 + $0xc] sm:$0xf]
  %v133 = vld [vmem:[%s6 + $0x10] sm:$0xf]
  %v134 = vld [vmem:[%s6 + $0x14] sm:$0xf]
  %v135 = vld [vmem:[%s6 + $0x18] sm:$0xf]
  %v136 = vld [vmem:[%s6 + $0x1c] sm:$0xf]
  %v137 = vld [vmem:[%s6 + $0x20] sm:$0xf]
  %v138 = vld [vmem:[%s6 + $0x24] sm:$0xf]
  %v139 = vld [vmem:[%s6 + $0x28] sm:$0xf]
  %v140 = vld [vmem:[%s6 + $0x2c] sm:$0xf]
  %v141 = vld [vmem:[%s6 + $0x30] sm:$0xf]
  %v142 = vld [vmem:[%s6 + $0x34] sm:$0xf]
  %v143 = vld [vmem:[%s6 + $0x38] sm:$0xf]
  %v144 = vld [vmem:[%s6 + $0x3c] sm:$0xf]
  %v161 = vunpack.c.l.b16 %v129
  %v162 = vunpack.c.l.b16 %v130
  %v163 = vunpack.c.l.b16 %v131
  %v164 = vunpack.c.l.b16 %v132
  %v165 = vunpack.c.l.b16 %v133
  %v166 = vunpack.c.l.b16 %v134
  %v167 = vunpack.c.l.b16 %v135
  %v168 = vunpack.c.l.b16 %v136
  %v169 = vunpack.c.l.b16 %v137
  %v170 = vunpack.c.l.b16 %v138
  %v171 = vunpack.c.l.b16 %v139
  %v172 = vunpack.c.l.b16 %v140
  %v173 = vunpack.c.l.b16 %v141
  %v174 = vunpack.c.l.b16 %v142
  %v175 = vunpack.c.l.b16 %v143
  %v176 = vunpack.c.l.b16 %v144
  %v177 = vpack.c.b16 %v162, %v161
  %v178 = vpack.c.b16 %v164, %v163
  %v179 = vpack.c.b16 %v166, %v165
  %v180 = vpack.c.b16 %v168, %v167
  %v181 = vpack.c.b16 %v170, %v169
  %v182 = vpack.c.b16 %v172, %v171
  %v183 = vpack.c.b16 %v174, %v173
  %v184 = vpack.c.b16 %v176, %v175
  %193 = vmatpush.bf16.msra.mxu0 %v184
  %194 = vmatpush.bf16.msra.mxu0 %v183
  %195 = vmatpush.bf16.msra.mxu0 %v182
  %196 = vmatpush.bf16.msra.mxu0 %v181
  %197 = vmatpush.bf16.msra.mxu0 %v180
  %198 = vmatpush.bf16.msra.mxu0 %v179
  %199 = vmatpush.bf16.msra.mxu0 %v178
  %200 = vmatpush.bf16.msra.mxu0 %v177
  %201 = vmatmul.bf16.gmra.mxu0 %v128
  %v202 = vpop.f32.mrf.mxu0
  %v203 = vadd.f32 0.0, %v202
  %v204 = vpop.f32.mrf.mxu0
  %v205 = vadd.f32 0.0, %v204
  %206 = vdwg.mxu0
  %v207 = vpack.c.bf16 %v205, %v203
  %v208 = vld [vmem:[%s7] sm:$0x1]
  %v210 = vperm.slane %v208, 0
  %212 = vmatpush.bf16.msra.mxu0 0
  %213 = vmatpush.bf16.msra.mxu0 0
  %214 = vmatpush.bf16.msra.mxu0 0
  %215 = vmatpush.bf16.msra.mxu0 0
  %216 = vmatpush.bf16.msra.mxu0 0
  %217 = vmatpush.bf16.msra.mxu0 0
  %218 = vmatpush.bf16.msra.mxu0 0
  %219 = vmatpush.bf16.msra.mxu0 %v207
  %220 = vmatmul.bf16.gmra.mxu0 %v82
  %v221 = vpop.f32.mrf.mxu0
  %v222 = vadd.f32 %v210, %v221
  %v223 = vpop.f32.mrf.mxu0
  %v224 = vadd.f32 %v210, %v223
  %225 = vdwg.mxu0
  %v226 = vmax.f32 %v222, 0.0
  %v227 = vmax.f32 %v224, 0.0
  %v228 = vpack.c.bf16 %v227, %v226
  %s229 = scalar_lea.vmem %s6, 64
  %v230 = vld [vmem:[%s229] sm:$0xf]
  %v231 = vld [vmem:[%s229 + $0x4] sm:$0xf]
  %v232 = vld [vmem:[%s229 + $0x8] sm:$0xf]
  %v233 = vld [vmem:[%s229 + $0xc] sm:$0xf]
  %v234 = vld [vmem:[%s229 + $0x10] sm:$0xf]
  %v235 = vld [vmem:[%s229 + $0x14] sm:$0xf]
  %v236 = vld [vmem:[%s229 + $0x18] sm:$0xf]
  %v237 = vld [vmem:[%s229 + $0x1c] sm:$0xf]
  %v238 = vld [vmem:[%s229 + $0x20] sm:$0xf]
  %v239 = vld [vmem:[%s229 + $0x24] sm:$0xf]
  %v240 = vld [vmem:[%s229 + $0x28] sm:$0xf]
  %v241 = vld [vmem:[%s229 + $0x2c] sm:$0xf]
  %v242 = vld [vmem:[%s229 + $0x30] sm:$0xf]
  %v243 = vld [vmem:[%s229 + $0x34] sm:$0xf]
  %v244 = vld [vmem:[%s229 + $0x38] sm:$0xf]
  %v245 = vld [vmem:[%s229 + $0x3c] sm:$0xf]
  %v262 = vunpack.c.l.b16 %v230
  %v263 = vunpack.c.l.b16 %v231
  %v264 = vunpack.c.l.b16 %v232
  %v265 = vunpack.c.l.b16 %v233
  %v266 = vunpack.c.l.b16 %v234
  %v267 = vunpack.c.l.b16 %v235
  %v268 = vunpack.c.l.b16 %v236
  %v269 = vunpack.c.l.b16 %v237
  %v270 = vunpack.c.l.b16 %v238
  %v271 = vunpack.c.l.b16 %v239
  %v272 = vunpack.c.l.b16 %v240
  %v273 = vunpack.c.l.b16 %v241
  %v274 = vunpack.c.l.b16 %v242
  %v275 = vunpack.c.l.b16 %v243
  %v276 = vunpack.c.l.b16 %v244
  %v277 = vunpack.c.l.b16 %v245
  %v278 = vpack.c.b16 %v263, %v262
  %v279 = vpack.c.b16 %v265, %v264
  %v280 = vpack.c.b16 %v267, %v266
  %v281 = vpack.c.b16 %v269, %v268
  %v282 = vpack.c.b16 %v271, %v270
  %v283 = vpack.c.b16 %v273, %v272
  %v284 = vpack.c.b16 %v275, %v274
  %v285 = vpack.c.b16 %v277, %v276
  %294 = vmatpush.bf16.msra.mxu0 %v285
  %295 = vmatpush.bf16.msra.mxu0 %v284
  %296 = vmatpush.bf16.msra.mxu0 %v283
  %297 = vmatpush.bf16.msra.mxu0 %v282
  %298 = vmatpush.bf16.msra.mxu0 %v281
  %299 = vmatpush.bf16.msra.mxu0 %v280
  %300 = vmatpush.bf16.msra.mxu0 %v279
  %301 = vmatpush.bf16.msra.mxu0 %v278
  %302 = vmatmul.bf16.gmra.mxu0 %v228
  %v303 = vpop.f32.mrf.mxu0
  %v304 = vadd.f32 0.0, %v303
  %v305 = vpop.f32.mrf.mxu0
  %v306 = vadd.f32 0.0, %v305
  %307 = vdwg.mxu0
  %v308 = vpack.c.bf16 %v306, %v304
  %s309 = scalar_lea.vmem %s7, 1
  %v310 = vld [vmem:[%s309] sm:$0x1]
  %v312 = vperm.slane %v310, 0
  %314 = vmatpush.bf16.msra.mxu0 0
  %315 = vmatpush.bf16.msra.mxu0 0
  %316 = vmatpush.bf16.msra.mxu0 0
  %317 = vmatpush.bf16.msra.mxu0 0
  %318 = vmatpush.bf16.msra.mxu0 0
  %319 = vmatpush.bf16.msra.mxu0 0
  %320 = vmatpush.bf16.msra.mxu0 0
  %321 = vmatpush.bf16.msra.mxu0 %v308
  %322 = vmatmul.bf16.gmra.mxu0 %v82
  %v323 = vpop.f32.mrf.mxu0
  %v324 = vadd.f32 %v312, %v323
  %v325 = vpop.f32.mrf.mxu0
  %v326 = vadd.f32 %v312, %v325
  %327 = vdwg.mxu0
  %v328 = vmax.f32 %v324, 0.0
  %v329 = vmax.f32 %v326, 0.0
  %v331 = vsel %vm80, %v66, 0
  %333 = vmatpush.msra.mxu0 0.0
  %334 = vmatpush.msra.mxu0 0.0
  %335 = vmatpush.msra.mxu0 0.0
  %336 = vmatpush.msra.mxu0 0.0
  %337 = vmatpush.msra.mxu0 0.0
  %338 = vmatpush.msra.mxu0 0.0
  %339 = vmatpush.msra.mxu0 0.0
  %340 = vmatpush.msra.mxu0 0.0
  %341 = vmatpush.msra.mxu0 0.0
  %342 = vmatpush.msra.mxu0 0.0
  %343 = vmatpush.msra.mxu0 0.0
  %344 = vmatpush.msra.mxu0 0.0
  %345 = vmatpush.msra.mxu0 0.0
  %346 = vmatpush.msra.mxu0 0.0
  %347 = vmatpush.msra.mxu0 %v329
  %348 = vmatpush.msra.mxu0 %v328
  %349 = vmatmul.f32.gmra.mxu0 %v331
  %v350 = vpop.f32.mrf.mxu0
  %v351 = vadd.f32 0.0, %v350
  %352 = vdwg.mxu0
  %v353 = vld [vmem:[%s8] sm:$0xf]
  %v354 = vld [vmem:[%s8 + $0x4] sm:$0xf]
  %v355 = vld [vmem:[%s9] sm:$0x1]
  %v357 = vperm.slane %v355, 0
  %v361 = vunpack.c.l.b16 %v353
  %v362 = vunpack.c.l.b16 %v354
  %v363 = vpack.c.b16 %v362, %v361
  %365 = vmatpush.bf16.msra.mxu0 0
  %366 = vmatpush.bf16.msra.mxu0 0
  %367 = vmatpush.bf16.msra.mxu0 0
  %368 = vmatpush.bf16.msra.mxu0 0
  %369 = vmatpush.bf16.msra.mxu0 0
  %370 = vmatpush.bf16.msra.mxu0 0
  %371 = vmatpush.bf16.msra.mxu0 0
  %372 = vmatpush.bf16.msra.mxu0 %v363
  %373 = vmatmul.bf16.gmra.mxu0 %v112
  %v374 = vpop.f32.mrf.mxu0
  %v375 = vadd.f32 %v357, %v374
  %v376 = vpop.f32.mrf.mxu0
  %v377 = vadd.f32 %v357, %v376
  %378 = vdwg.mxu0
  %vm379 = vcmask 64512
  %v381 = vsel %vm379, %v64, 0
  %v384 = vsel %vm379, %v65, 0
  %386 = vmatpush.msra.mxu0 0.0
  %387 = vmatpush.msra.mxu0 0.0
  %388 = vmatpush.msra.mxu0 0.0
  %389 = vmatpush.msra.mxu0 0.0
  %390 = vmatpush.msra.mxu0 0.0
  %391 = vmatpush.msra.mxu0 0.0
  %392 = vmatpush.msra.mxu0 0.0
  %393 = vmatpush.msra.mxu0 0.0
  %394 = vmatpush.msra.mxu0 0.0
  %395 = vmatpush.msra.mxu0 0.0
  %396 = vmatpush.msra.mxu0 0.0
  %397 = vmatpush.msra.mxu0 0.0
  %398 = vmatpush.msra.mxu0 0.0
  %399 = vmatpush.msra.mxu0 0.0
  %400 = vmatpush.msra.mxu0 0.0
  %401 = vmatpush.msra.mxu0 %v351
  %402 = vmatmul.f32.gmra.mxu0 %v381
  %v403 = vpop.f32.mrf.mxu0
  %v404 = vadd.f32 0.0, %v403
  %405 = vmatmul.f32.gmra.mxu0 %v384
  %v406 = vpop.f32.mrf.mxu0
  %v407 = vadd.f32 0.0, %v406
  %408 = vdwg.mxu0
  %v409 = vadd.f32 %v375, %v404
  %v410 = vadd.f32 %v377, %v407
  %v411 = vpack.c.bf16 %v410, %v409
  %v412 = vld [vmem:[%s10] sm:$0xf]
  %v413 = vld [vmem:[%s10 + $0x4] sm:$0xf]
  %v414 = vld [vmem:[%s10 + $0x8] sm:$0xf]
  %v415 = vld [vmem:[%s10 + $0xc] sm:$0xf]
  %v416 = vld [vmem:[%s10 + $0x10] sm:$0xf]
  %v417 = vld [vmem:[%s10 + $0x14] sm:$0xf]
  %v418 = vld [vmem:[%s10 + $0x18] sm:$0xf]
  %v419 = vld [vmem:[%s10 + $0x1c] sm:$0xf]
  %v420 = vld [vmem:[%s10 + $0x20] sm:$0xf]
  %v421 = vld [vmem:[%s10 + $0x24] sm:$0xf]
  %v422 = vld [vmem:[%s10 + $0x28] sm:$0xf]
  %v423 = vld [vmem:[%s10 + $0x2c] sm:$0xf]
  %v424 = vld [vmem:[%s10 + $0x30] sm:$0xf]
  %v425 = vld [vmem:[%s10 + $0x34] sm:$0xf]
  %v426 = vld [vmem:[%s10 + $0x38] sm:$0xf]
  %v427 = vld [vmem:[%s10 + $0x3c] sm:$0xf]
  %v444 = vunpack.c.l.b16 %v412
  %v445 = vunpack.c.l.b16 %v413
  %v446 = vunpack.c.l.b16 %v414
  %v447 = vunpack.c.l.b16 %v415
  %v448 = vunpack.c.l.b16 %v416
  %v449 = vunpack.c.l.b16 %v417
  %v450 = vunpack.c.l.b16 %v418
  %v451 = vunpack.c.l.b16 %v419
  %v452 = vunpack.c.l.b16 %v420
  %v453 = vunpack.c.l.b16 %v421
  %v454 = vunpack.c.l.b16 %v422
  %v455 = vunpack.c.l.b16 %v423
  %v456 = vunpack.c.l.b16 %v424
  %v457 = vunpack.c.l.b16 %v425
  %v458 = vunpack.c.l.b16 %v426
  %v459 = vunpack.c.l.b16 %v427
  %v460 = vpack.c.b16 %v445, %v444
  %v461 = vpack.c.b16 %v447, %v446
  %v462 = vpack.c.b16 %v449, %v448
  %v463 = vpack.c.b16 %v451, %v450
  %v464 = vpack.c.b16 %v453, %v452
  %v465 = vpack.c.b16 %v455, %v454
  %v466 = vpack.c.b16 %v457, %v456
  %v467 = vpack.c.b16 %v459, %v458
  %476 = vmatpush.bf16.msra.mxu0 %v467
  %477 = vmatpush.bf16.msra.mxu0 %v466
  %478 = vmatpush.bf16.msra.mxu0 %v465
  %479 = vmatpush.bf16.msra.mxu0 %v464
  %480 = vmatpush.bf16.msra.mxu0 %v463
  %481 = vmatpush.bf16.msra.mxu0 %v462
  %482 = vmatpush.bf16.msra.mxu0 %v461
  %483 = vmatpush.bf16.msra.mxu0 %v460
  %484 = vmatmul.bf16.gmra.mxu0 %v411
  %v485 = vpop.f32.mrf.mxu0
  %v486 = vadd.f32 0.0, %v485
  %v487 = vpop.f32.mrf.mxu0
  %v488 = vadd.f32 0.0, %v487
  %489 = vdwg.mxu0
  %v490 = vpack.c.bf16 %v488, %v486
  %v491 = vld [vmem:[%s11] sm:$0x1]
  %v493 = vperm.slane %v491, 0
  %495 = vmatpush.bf16.msra.mxu0 0
  %496 = vmatpush.bf16.msra.mxu0 0
  %497 = vmatpush.bf16.msra.mxu0 0
  %498 = vmatpush.bf16.msra.mxu0 0
  %499 = vmatpush.bf16.msra.mxu0 0
  %500 = vmatpush.bf16.msra.mxu0 0
  %501 = vmatpush.bf16.msra.mxu0 0
  %502 = vmatpush.bf16.msra.mxu0 %v490
  %503 = vmatmul.bf16.gmra.mxu0 %v82
  %v504 = vpop.f32.mrf.mxu0
  %v505 = vadd.f32 %v493, %v504
  %v506 = vpop.f32.mrf.mxu0
  %v507 = vadd.f32 %v493, %v506
  %508 = vdwg.mxu0
  %v509 = vmax.f32 %v505, 0.0
  %v510 = vmax.f32 %v507, 0.0
  %v511 = vadd.f32 %v509, %v404
  %v512 = vadd.f32 %v510, %v407
  %v513 = vpack.c.bf16 %v512, %v511
  %s514 = scalar_lea.vmem %s10, 64
  %v515 = vld [vmem:[%s514] sm:$0xf]
  %v516 = vld [vmem:[%s514 + $0x4] sm:$0xf]
  %v517 = vld [vmem:[%s514 + $0x8] sm:$0xf]
  %v518 = vld [vmem:[%s514 + $0xc] sm:$0xf]
  %v519 = vld [vmem:[%s514 + $0x10] sm:$0xf]
  %v520 = vld [vmem:[%s514 + $0x14] sm:$0xf]
  %v521 = vld [vmem:[%s514 + $0x18] sm:$0xf]
  %v522 = vld [vmem:[%s514 + $0x1c] sm:$0xf]
  %v523 = vld [vmem:[%s514 + $0x20] sm:$0xf]
  %v524 = vld [vmem:[%s514 + $0x24] sm:$0xf]
  %v525 = vld [vmem:[%s514 + $0x28] sm:$0xf]
  %v526 = vld [vmem:[%s514 + $0x2c] sm:$0xf]
  %v527 = vld [vmem:[%s514 + $0x30] sm:$0xf]
  %v528 = vld [vmem:[%s514 + $0x34] sm:$0xf]
  %v529 = vld [vmem:[%s514 + $0x38] sm:$0xf]
  %v530 = vld [vmem:[%s514 + $0x3c] sm:$0xf]
  %v547 = vunpack.c.l.b16 %v515
  %v548 = vunpack.c.l.b16 %v516
  %v549 = vunpack.c.l.b16 %v517
  %v550 = vunpack.c.l.b16 %v518
  %v551 = vunpack.c.l.b16 %v519
  %v552 = vunpack.c.l.b16 %v520
  %v553 = vunpack.c.l.b16 %v521
  %v554 = vunpack.c.l.b16 %v522
  %v555 = vunpack.c.l.b16 %v523
  %v556 = vunpack.c.l.b16 %v524
  %v557 = vunpack.c.l.b16 %v525
  %v558 = vunpack.c.l.b16 %v526
  %v559 = vunpack.c.l.b16 %v527
  %v560 = vunpack.c.l.b16 %v528
  %v561 = vunpack.c.l.b16 %v529
  %v562 = vunpack.c.l.b16 %v530
  %v563 = vpack.c.b16 %v548, %v547
  %v564 = vpack.c.b16 %v550, %v549
  %v565 = vpack.c.b16 %v552, %v551
  %v566 = vpack.c.b16 %v554, %v553
  %v567 = vpack.c.b16 %v556, %v555
  %v568 = vpack.c.b16 %v558, %v557
  %v569 = vpack.c.b16 %v560, %v559
  %v570 = vpack.c.b16 %v562, %v561
  %579 = vmatpush.bf16.msra.mxu0 %v570
  %580 = vmatpush.bf16.msra.mxu0 %v569
  %581 = vmatpush.bf16.msra.mxu0 %v568
  %582 = vmatpush.bf16.msra.mxu0 %v567
  %583 = vmatpush.bf16.msra.mxu0 %v566
  %584 = vmatpush.bf16.msra.mxu0 %v565
  %585 = vmatpush.bf16.msra.mxu0 %v564
  %586 = vmatpush.bf16.msra.mxu0 %v563
  %587 = vmatmul.bf16.gmra.mxu0 %v513
  %v588 = vpop.f32.mrf.mxu0
  %v589 = vadd.f32 0.0, %v588
  %v590 = vpop.f32.mrf.mxu0
  %v591 = vadd.f32 0.0, %v590
  %592 = vdwg.mxu0
  %v593 = vpack.c.bf16 %v591, %v589
  %s594 = scalar_lea.vmem %s11, 1
  %v595 = vld [vmem:[%s594] sm:$0x1]
  %v597 = vperm.slane %v595, 0
  %599 = vmatpush.bf16.msra.mxu0 0
  %600 = vmatpush.bf16.msra.mxu0 0
  %601 = vmatpush.bf16.msra.mxu0 0
  %602 = vmatpush.bf16.msra.mxu0 0
  %603 = vmatpush.bf16.msra.mxu0 0
  %604 = vmatpush.bf16.msra.mxu0 0
  %605 = vmatpush.bf16.msra.mxu0 0
  %606 = vmatpush.bf16.msra.mxu0 %v593
  %607 = vmatmul.bf16.gmra.mxu0 %v82
  %v608 = vpop.f32.mrf.mxu0
  %v609 = vadd.f32 %v597, %v608
  %v610 = vpop.f32.mrf.mxu0
  %v611 = vadd.f32 %v597, %v610
  %612 = vdwg.mxu0
  %v613 = vmax.f32 %v609, 0.0
  %v614 = vmax.f32 %v611, 0.0
  %615 = vmatpush.msra.mxu0 0.0
  %616 = vmatpush.msra.mxu0 0.0
  %617 = vmatpush.msra.mxu0 0.0
  %618 = vmatpush.msra.mxu0 0.0
  %619 = vmatpush.msra.mxu0 0.0
  %620 = vmatpush.msra.mxu0 0.0
  %621 = vmatpush.msra.mxu0 0.0
  %622 = vmatpush.msra.mxu0 0.0
  %623 = vmatpush.msra.mxu0 0.0
  %624 = vmatpush.msra.mxu0 0.0
  %625 = vmatpush.msra.mxu0 0.0
  %626 = vmatpush.msra.mxu0 0.0
  %627 = vmatpush.msra.mxu0 0.0
  %628 = vmatpush.msra.mxu0 0.0
  %629 = vmatpush.msra.mxu0 %v614
  %630 = vmatpush.msra.mxu0 %v613
  %631 = vmatmul.f32.gmra.mxu0 %v331
  %v632 = vpop.f32.mrf.mxu0
  %v633 = vadd.f32 %v351, %v632
  %634 = vdwg.mxu0
  %v635 = vld [vmem:[%s12] sm:$0xf]
  %v636 = vld [vmem:[%s12 + $0x4] sm:$0xf]
  %v637 = vld [vmem:[%s13] sm:$0x1]
  %v639 = vperm.slane %v637, 0
  %v643 = vunpack.c.l.b16 %v635
  %v644 = vunpack.c.l.b16 %v636
  %v645 = vpack.c.b16 %v644, %v643
  %647 = vmatpush.bf16.msra.mxu0 0
  %648 = vmatpush.bf16.msra.mxu0 0
  %649 = vmatpush.bf16.msra.mxu0 0
  %650 = vmatpush.bf16.msra.mxu0 0
  %651 = vmatpush.bf16.msra.mxu0 0
  %652 = vmatpush.bf16.msra.mxu0 0
  %653 = vmatpush.bf16.msra.mxu0 0
  %654 = vmatpush.bf16.msra.mxu0 %v645
  %655 = vmatmul.bf16.gmra.mxu0 %v112
  %v656 = vpop.f32.mrf.mxu0
  %v657 = vadd.f32 %v639, %v656
  %v658 = vpop.f32.mrf.mxu0
  %v659 = vadd.f32 %v639, %v658
  %660 = vdwg.mxu0
  %661 = vmatpush.msra.mxu0 0.0
  %662 = vmatpush.msra.mxu0 0.0
  %663 = vmatpush.msra.mxu0 0.0
  %664 = vmatpush.msra.mxu0 0.0
  %665 = vmatpush.msra.mxu0 0.0
  %666 = vmatpush.msra.mxu0 0.0
  %667 = vmatpush.msra.mxu0 0.0
  %668 = vmatpush.msra.mxu0 0.0
  %669 = vmatpush.msra.mxu0 0.0
  %670 = vmatpush.msra.mxu0 0.0
  %671 = vmatpush.msra.mxu0 0.0
  %672 = vmatpush.msra.mxu0 0.0
  %673 = vmatpush.msra.mxu0 0.0
  %674 = vmatpush.msra.mxu0 0.0
  %675 = vmatpush.msra.mxu0 0.0
  %676 = vmatpush.msra.mxu0 %v633
  %677 = vmatmul.f32.gmra.mxu0 %v381
  %v678 = vpop.f32.mrf.mxu0
  %v679 = vadd.f32 0.0, %v678
  %680 = vmatmul.f32.gmra.mxu0 %v384
  %v681 = vpop.f32.mrf.mxu0
  %v682 = vadd.f32 0.0, %v681
  %683 = vdwg.mxu0
  %v684 = vadd.f32 %v657, %v679
  %v685 = vadd.f32 %v659, %v682
  %v686 = vpack.c.bf16 %v685, %v684
  %v687 = vld [vmem:[%s14] sm:$0xf]
  %v688 = vld [vmem:[%s14 + $0x4] sm:$0xf]
  %v689 = vld [vmem:[%s14 + $0x8] sm:$0xf]
  %v690 = vld [vmem:[%s14 + $0xc] sm:$0xf]
  %v691 = vld [vmem:[%s14 + $0x10] sm:$0xf]
  %v692 = vld [vmem:[%s14 + $0x14] sm:$0xf]
  %v693 = vld [vmem:[%s14 + $0x18] sm:$0xf]
  %v694 = vld [vmem:[%s14 + $0x1c] sm:$0xf]
  %v695 = vld [vmem:[%s14 + $0x20] sm:$0xf]
  %v696 = vld [vmem:[%s14 + $0x24] sm:$0xf]
  %v697 = vld [vmem:[%s14 + $0x28] sm:$0xf]
  %v698 = vld [vmem:[%s14 + $0x2c] sm:$0xf]
  %v699 = vld [vmem:[%s14 + $0x30] sm:$0xf]
  %v700 = vld [vmem:[%s14 + $0x34] sm:$0xf]
  %v701 = vld [vmem:[%s14 + $0x38] sm:$0xf]
  %v702 = vld [vmem:[%s14 + $0x3c] sm:$0xf]
  %v719 = vunpack.c.l.b16 %v687
  %v720 = vunpack.c.l.b16 %v688
  %v721 = vunpack.c.l.b16 %v689
  %v722 = vunpack.c.l.b16 %v690
  %v723 = vunpack.c.l.b16 %v691
  %v724 = vunpack.c.l.b16 %v692
  %v725 = vunpack.c.l.b16 %v693
  %v726 = vunpack.c.l.b16 %v694
  %v727 = vunpack.c.l.b16 %v695
  %v728 = vunpack.c.l.b16 %v696
  %v729 = vunpack.c.l.b16 %v697
  %v730 = vunpack.c.l.b16 %v698
  %v731 = vunpack.c.l.b16 %v699
  %v732 = vunpack.c.l.b16 %v700
  %v733 = vunpack.c.l.b16 %v701
  %v734 = vunpack.c.l.b16 %v702
  %v735 = vpack.c.b16 %v720, %v719
  %v736 = vpack.c.b16 %v722, %v721
  %v737 = vpack.c.b16 %v724, %v723
  %v738 = vpack.c.b16 %v726, %v725
  %v739 = vpack.c.b16 %v728, %v727
  %v740 = vpack.c.b16 %v730, %v729
  %v741 = vpack.c.b16 %v732, %v731
  %v742 = vpack.c.b16 %v734, %v733
  %751 = vmatpush.bf16.msra.mxu0 %v742
  %752 = vmatpush.bf16.msra.mxu0 %v741
  %753 = vmatpush.bf16.msra.mxu0 %v740
  %754 = vmatpush.bf16.msra.mxu0 %v739
  %755 = vmatpush.bf16.msra.mxu0 %v738
  %756 = vmatpush.bf16.msra.mxu0 %v737
  %757 = vmatpush.bf16.msra.mxu0 %v736
  %758 = vmatpush.bf16.msra.mxu0 %v735
  %759 = vmatmul.bf16.gmra.mxu0 %v686
  %v760 = vpop.f32.mrf.mxu0
  %v761 = vadd.f32 0.0, %v760
  %v762 = vpop.f32.mrf.mxu0
  %v763 = vadd.f32 0.0, %v762
  %764 = vdwg.mxu0
  %v765 = vpack.c.bf16 %v763, %v761
  %v766 = vld [vmem:[%s15] sm:$0x1]
  %v768 = vperm.slane %v766, 0
  %770 = vmatpush.bf16.msra.mxu0 0
  %771 = vmatpush.bf16.msra.mxu0 0
  %772 = vmatpush.bf16.msra.mxu0 0
  %773 = vmatpush.bf16.msra.mxu0 0
  %774 = vmatpush.bf16.msra.mxu0 0
  %775 = vmatpush.bf16.msra.mxu0 0
  %776 = vmatpush.bf16.msra.mxu0 0
  %777 = vmatpush.bf16.msra.mxu0 %v765
  %778 = vmatmul.bf16.gmra.mxu0 %v82
  %v779 = vpop.f32.mrf.mxu0
  %v780 = vadd.f32 %v768, %v779
  %v781 = vpop.f32.mrf.mxu0
  %v782 = vadd.f32 %v768, %v781
  %783 = vdwg.mxu0
  %v784 = vmax.f32 %v780, 0.0
  %v785 = vmax.f32 %v782, 0.0
  %v786 = vadd.f32 %v784, %v679
  %v787 = vadd.f32 %v785, %v682
  %v788 = vpack.c.bf16 %v787, %v786
  %s789 = scalar_lea.vmem %s14, 64
  %v790 = vld [vmem:[%s789] sm:$0xf]
  %v791 = vld [vmem:[%s789 + $0x4] sm:$0xf]
  %v792 = vld [vmem:[%s789 + $0x8] sm:$0xf]
  %v793 = vld [vmem:[%s789 + $0xc] sm:$0xf]
  %v794 = vld [vmem:[%s789 + $0x10] sm:$0xf]
  %v795 = vld [vmem:[%s789 + $0x14] sm:$0xf]
  %v796 = vld [vmem:[%s789 + $0x18] sm:$0xf]
  %v797 = vld [vmem:[%s789 + $0x1c] sm:$0xf]
  %v798 = vld [vmem:[%s789 + $0x20] sm:$0xf]
  %v799 = vld [vmem:[%s789 + $0x24] sm:$0xf]
  %v800 = vld [vmem:[%s789 + $0x28] sm:$0xf]
  %v801 = vld [vmem:[%s789 + $0x2c] sm:$0xf]
  %v802 = vld [vmem:[%s789 + $0x30] sm:$0xf]
  %v803 = vld [vmem:[%s789 + $0x34] sm:$0xf]
  %v804 = vld [vmem:[%s789 + $0x38] sm:$0xf]
  %v805 = vld [vmem:[%s789 + $0x3c] sm:$0xf]
  %v822 = vunpack.c.l.b16 %v790
  %v823 = vunpack.c.l.b16 %v791
  %v824 = vunpack.c.l.b16 %v792
  %v825 = vunpack.c.l.b16 %v793
  %v826 = vunpack.c.l.b16 %v794
  %v827 = vunpack.c.l.b16 %v795
  %v828 = vunpack.c.l.b16 %v796
  %v829 = vunpack.c.l.b16 %v797
  %v830 = vunpack.c.l.b16 %v798
  %v831 = vunpack.c.l.b16 %v799
  %v832 = vunpack.c.l.b16 %v800
  %v833 = vunpack.c.l.b16 %v801
  %v834 = vunpack.c.l.b16 %v802
  %v835 = vunpack.c.l.b16 %v803
  %v836 = vunpack.c.l.b16 %v804
  %v837 = vunpack.c.l.b16 %v805
  %v838 = vpack.c.b16 %v823, %v822
  %v839 = vpack.c.b16 %v825, %v824
  %v840 = vpack.c.b16 %v827, %v826
  %v841 = vpack.c.b16 %v829, %v828
  %v842 = vpack.c.b16 %v831, %v830
  %v843 = vpack.c.b16 %v833, %v832
  %v844 = vpack.c.b16 %v835, %v834
  %v845 = vpack.c.b16 %v837, %v836
  %854 = vmatpush.bf16.msra.mxu0 %v845
  %855 = vmatpush.bf16.msra.mxu0 %v844
  %856 = vmatpush.bf16.msra.mxu0 %v843
  %857 = vmatpush.bf16.msra.mxu0 %v842
  %858 = vmatpush.bf16.msra.mxu0 %v841
  %859 = vmatpush.bf16.msra.mxu0 %v840
  %860 = vmatpush.bf16.msra.mxu0 %v839
  %861 = vmatpush.bf16.msra.mxu0 %v838
  %862 = vmatmul.bf16.gmra.mxu0 %v788
  %v863 = vpop.f32.mrf.mxu0
  %v864 = vadd.f32 0.0, %v863
  %v865 = vpop.f32.mrf.mxu0
  %v866 = vadd.f32 0.0, %v865
  %867 = vdwg.mxu0
  %v868 = vpack.c.bf16 %v866, %v864
  %s869 = scalar_lea.vmem %s15, 1
  %v870 = vld [vmem:[%s869] sm:$0x1]
  %v872 = vperm.slane %v870, 0
  %874 = vmatpush.bf16.msra.mxu0 0
  %875 = vmatpush.bf16.msra.mxu0 0
  %876 = vmatpush.bf16.msra.mxu0 0
  %877 = vmatpush.bf16.msra.mxu0 0
  %878 = vmatpush.bf16.msra.mxu0 0
  %879 = vmatpush.bf16.msra.mxu0 0
  %880 = vmatpush.bf16.msra.mxu0 0
  %881 = vmatpush.bf16.msra.mxu0 %v868
  %882 = vmatmul.bf16.gmra.mxu0 %v82
  %v883 = vpop.f32.mrf.mxu0
  %v884 = vadd.f32 %v872, %v883
  %v885 = vpop.f32.mrf.mxu0
  %v886 = vadd.f32 %v872, %v885
  %887 = vdwg.mxu0
  %v888 = vmax.f32 %v884, 0.0
  %v889 = vmax.f32 %v886, 0.0
  %890 = vmatpush.msra.mxu0 0.0
  %891 = vmatpush.msra.mxu0 0.0
  %892 = vmatpush.msra.mxu0 0.0
  %893 = vmatpush.msra.mxu0 0.0
  %894 = vmatpush.msra.mxu0 0.0
  %895 = vmatpush.msra.mxu0 0.0
  %896 = vmatpush.msra.mxu0 0.0
  %897 = vmatpush.msra.mxu0 0.0
  %898 = vmatpush.msra.mxu0 0.0
  %899 = vmatpush.msra.mxu0 0.0
  %900 = vmatpush.msra.mxu0 0.0
  %901 = vmatpush.msra.mxu0 0.0
  %902 = vmatpush.msra.mxu0 0.0
  %903 = vmatpush.msra.mxu0 0.0
  %904 = vmatpush.msra.mxu0 %v889
  %905 = vmatpush.msra.mxu0 %v888
  %906 = vmatmul.f32.gmra.mxu0 %v331
  %v907 = vpop.f32.mrf.mxu0
  %v908 = vadd.f32 %v633, %v907
  %909 = vdwg.mxu0
  %910 = vst [vmem:[%s19] sm:$0xff] %v908
  %v911 = vpack.c.bf16 %v908, %v908
  %v912 = vld [vmem:[%s16] sm:$0xf]
  %v913 = vld [vmem:[%s16 + $0x4] sm:$0xf]
  %v914 = vld [vmem:[%s16 + $0x8] sm:$0xf]
  %v915 = vld [vmem:[%s16 + $0xc] sm:$0xf]
  %v916 = vld [vmem:[%s16 + $0x10] sm:$0xf]
  %v917 = vld [vmem:[%s16 + $0x14] sm:$0xf]
  %v918 = vld [vmem:[%s16 + $0x18] sm:$0xf]
  %v919 = vld [vmem:[%s16 + $0x1c] sm:$0xf]
  %v920 = vld [vmem:[%s16 + $0x20] sm:$0xf]
  %v921 = vld [vmem:[%s16 + $0x24] sm:$0xf]
  %v922 = vld [vmem:[%s16 + $0x28] sm:$0xf]
  %v923 = vld [vmem:[%s16 + $0x2c] sm:$0xf]
  %v924 = vld [vmem:[%s16 + $0x30] sm:$0xf]
  %v925 = vld [vmem:[%s16 + $0x34] sm:$0xf]
  %v926 = vld [vmem:[%s16 + $0x38] sm:$0xf]
  %v927 = vld [vmem:[%s16 + $0x3c] sm:$0xf]
  %v928 = vld [vmem:[%s17] sm:$0x1]
  %v930 = vperm.slane %v928, 0
  %v948 = vunpack.c.l.b16 %v912
  %v949 = vunpack.c.l.b16 %v913
  %v950 = vunpack.c.l.b16 %v914
  %v951 = vunpack.c.l.b16 %v915
  %v952 = vunpack.c.l.b16 %v916
  %v953 = vunpack.c.l.b16 %v917
  %v954 = vunpack.c.l.b16 %v918
  %v955 = vunpack.c.l.b16 %v919
  %v956 = vunpack.c.l.b16 %v920
  %v957 = vunpack.c.l.b16 %v921
  %v958 = vunpack.c.l.b16 %v922
  %v959 = vunpack.c.l.b16 %v923
  %v960 = vunpack.c.l.b16 %v924
  %v961 = vunpack.c.l.b16 %v925
  %v962 = vunpack.c.l.b16 %v926
  %v963 = vunpack.c.l.b16 %v927
  %v964 = vpack.c.b16 %v949, %v948
  %v965 = vpack.c.b16 %v951, %v950
  %v966 = vpack.c.b16 %v953, %v952
  %v967 = vpack.c.b16 %v955, %v954
  %v968 = vpack.c.b16 %v957, %v956
  %v969 = vpack.c.b16 %v959, %v958
  %v970 = vpack.c.b16 %v961, %v960
  %v971 = vpack.c.b16 %v963, %v962
  %980 = vmatpush.bf16.msra.mxu0 %v971
  %981 = vmatpush.bf16.msra.mxu0 %v970
  %982 = vmatpush.bf16.msra.mxu0 %v969
  %983 = vmatpush.bf16.msra.mxu0 %v968
  %984 = vmatpush.bf16.msra.mxu0 %v967
  %985 = vmatpush.bf16.msra.mxu0 %v966
  %986 = vmatpush.bf16.msra.mxu0 %v965
  %987 = vmatpush.bf16.msra.mxu0 %v964
  %988 = vmatmul.bf16.gmra.mxu0 %v911
  %v989 = vpop.f32.mrf.mxu0
  %v990 = vadd.f32 %v930, %v989
  %v991 = vpop.f32.mrf.mxu0
  %992 = vdwg.mxu0
  %993 = vst [vmem:[%s18] sm:$0xff] %v990
  // Predicated region
  $region74: #{res_graph_block_gnn_forward.1} parent=0 // pred_check
    _
  $region75: #{res_graph_block_gnn_forward.1} parent=0 // pred_check_branch
    %995 = sbr.rel (0) target = $region77
  $region76: #{res_graph_block_gnn_forward.1} parent=0 // pred_region
    _
  $region77: #{res_graph_block_gnn_forward.1} parent=0 // pred_fallthru
    _
  // Predicated region
  $region78: #{res_graph_block_gnn_forward.1} parent=0 // pred_check
    _
  $region79: #{res_graph_block_gnn_forward.1} parent=0 // pred_check_branch
    %997 = sbr.rel (0) target = $region81
  $region80: #{res_graph_block_gnn_forward.1} parent=0 // pred_region
    _
  $region81: #{res_graph_block_gnn_forward.1} parent=0 // pred_fallthru
    _
  // Predicated region
  $region82: #{res_graph_block_gnn_forward.1} parent=0 // pred_check
    _
  $region83: #{res_graph_block_gnn_forward.1} parent=0 // pred_check_branch
    %999 = sbr.rel (0) target = $region85
  $region84: #{res_graph_block_gnn_forward.1} parent=0 // pred_region
    _
  $region85: #{res_graph_block_gnn_forward.1} parent=0 // pred_fallthru
    _
  // Predicated region
  $region86: #{res_graph_block_gnn_forward.1} parent=0 // pred_check
    _
  $region87: #{res_graph_block_gnn_forward.1} parent=0 // pred_check_branch
    %1001 = sbr.rel (0) target = $region89
  $region88: #{res_graph_block_gnn_forward.1} parent=0 // pred_region
    _
  $region89: #{res_graph_block_gnn_forward.1} parent=0 // pred_fallthru
    _

</llo_original>
